<compile_context>
chip_gen: v7x
topology: tpu7x:2x2x1
jax: 0.10.0
libtpu: 0.0.40
codegen_flags: <defaults>
</compile_context>

<pallas_src>
import jax
import jax.numpy as jnp
from jax.experimental import pallas as pl
from jax.experimental.pallas import tpu as pltpu

EPSILON = 1e-07
LANE = 128
ACC_ROWS = 16            # accumulator rows: multiple of 8 (f32) and 16 (bf16/f16 sublane tiling)
MAX_BLOCK_ROWS = 2048    # 2048x128 f32 block = 1 MiB; double-buffered 2 inputs = 4 MiB VMEM
NUM_CORE_SPLITS = 2      # leading "parallel" axis: one chunk per TensorCore on v7x;
                         # plain sequential chunks (harmless) on v5e / v6e.
SMALL_INPUT_ELEMS = 8 * LANE   # below this, plain-JAX fast path (latency win).
                               # TODO(synk): raise toward ~128K for latency-critical serving.
VMEM_LIMIT_BYTES = 16 * 1024 * 1024


def _cdiv(a, b):
    return -(-a // b)


def _round_up(x, m):
    return _cdiv(x, m) * m


def _ensure_supported_float(x):
    if x.dtype in (jnp.dtype(jnp.float32), jnp.dtype(jnp.bfloat16), jnp.dtype(jnp.float16)):
        return x
    return x.astype(jnp.float32)  # bool / int labels, f64, etc.


def _f1_from_sums(tp, sp, st):
    # sp = sum(y_pred) = tp + fp ; st = sum(y_true) = tp + fn
    precision = tp / (sp + EPSILON)
    recall = tp / (st + EPSILON)
    f1 = 2.0 * (precision * recall) / (precision + recall + EPSILON)
    return jnp.clip(f1, EPSILON, 1.0 - EPSILON)


def _make_f1_kernel(n_rows, block_rows, steps_per_core, need_mask):
    g_blocks = block_rows // ACC_ROWS  # sub-tiles reduced into the small accumulators

    def kernel(yp_ref, yt_ref, o_ref, tp_acc, sp_acc, st_acc):
        c = pl.program_id(0)   # core-split index ("parallel")
        j = pl.program_id(1)   # reduction step within this core's chunk ("arbitrary")

        @pl.when(j == 0)
        def _():
            tp_acc[...] = jnp.zeros_like(tp_acc)
            sp_acc[...] = jnp.zeros_like(sp_acc)
            st_acc[...] = jnp.zeros_like(st_acc)

        yp = yp_ref[...].astype(jnp.float32)
        yt = yt_ref[...].astype(jnp.float32)

        def accumulate(p, t):
            # Reduce (block_rows, LANE) -> (ACC_ROWS, LANE) with VALU adds only
            # (row groups of 16 keep (8,128) tiling intact), then RMW the tiny
            # accumulators: 3 vreg-pairs of acc traffic per 2 MiB of input.
            ps = p.reshape(g_blocks, ACC_ROWS, LANE)
            ts = t.reshape(g_blocks, ACC_ROWS, LANE)
            tp_acc[...] += jnp.sum(ps * ts, axis=0)
            sp_acc[...] += jnp.sum(ps, axis=0)
            st_acc[...] += jnp.sum(ts, axis=0)

        if need_mask:
            g = c * steps_per_core + j              # un-clamped global block index
            is_partial = (g + 1) * block_rows > n_rows

            @pl.when(jnp.logical_not(is_partial))
            def _():
                accumulate(yp, yt)

            @pl.when(is_partial)
            def _():
                # Rows beyond the real data (partial last block, or a fully
                # out-of-range block of the last core) hold garbage: zero BOTH
                # operands there so tp/sp/st are unaffected.
                row = jax.lax.broadcasted_iota(jnp.int32, yp.shape, 0)
                valid = (g * block_rows + row) < n_rows
                accumulate(jnp.where(valid, yp, 0.0), jnp.where(valid, yt, 0.0))
        else:
            accumulate(yp, yt)

        @pl.when(j == steps_per_core - 1)
        def _():
            # One cross-lane reduce per core, then pack tp/sp/st into
            # sublanes 0..2 of this core's (1, 8, LANE) partials tile.
            tp = jnp.sum(tp_acc[...])
            sp = jnp.sum(sp_acc[...])
            st = jnp.sum(st_acc[...])
            sub = jax.lax.broadcasted_iota(jnp.int32, o_ref.shape, 1)
            o_ref[...] = jnp.where(sub == 0, tp,
                          jnp.where(sub == 1, sp,
                           jnp.where(sub == 2, st, 0.0)))

    return kernel


@jax.jit
def f1_score(y_pred, y_true):
    assert y_pred.shape == y_true.shape
    yp = _ensure_supported_float(jnp.ravel(y_pred))
    yt = _ensure_supported_float(jnp.ravel(y_true))
    n = yp.shape[0]

    # Small-input fast path: kernel-launch overhead would dominate.
    if n < SMALL_INPUT_ELEMS:
        ypf = yp.astype(jnp.float32)
        ytf = yt.astype(jnp.float32)
        return _f1_from_sums(jnp.sum(ypf * ytf), jnp.sum(ypf), jnp.sum(ytf))

    n_rows = n // LANE          # complete 128-wide rows (no padding copy is made)
    rem = n - n_rows * LANE     # 0..127 trailing elements

    # Tail (<128 elems): trivial JAX prologue, folded into the epilogue below.
    if rem:
        yp_t = yp[n_rows * LANE:].astype(jnp.float32)
        yt_t = yt[n_rows * LANE:].astype(jnp.float32)
        tail_tp = jnp.sum(yp_t * yt_t)
        tail_sp = jnp.sum(yp_t)
        tail_st = jnp.sum(yt_t)
    else:
        tail_tp = tail_sp = tail_st = jnp.float32(0.0)

    yp2 = yp[: n_rows * LANE].reshape(n_rows, LANE)
    yt2 = yt[: n_rows * LANE].reshape(n_rows, LANE)

    block_rows = min(MAX_BLOCK_ROWS, _round_up(n_rows, ACC_ROWS))
    assert block_rows % ACC_ROWS == 0
    total_blocks = _cdiv(n_rows, block_rows)
    num_splits = min(NUM_CORE_SPLITS, total_blocks)
    steps_per_core = _cdiv(total_blocks, num_splits)
    need_mask = (n_rows % block_rows != 0) or (steps_per_core * num_splits != total_blocks)

    def in_map(c, j):
        # Chunked split: core c handles blocks [c*steps_per_core, (c+1)*steps_per_core).
        # Clamp so a trailing out-of-range block re-reads valid memory; its
        # contribution is fully masked to zero in the kernel.
        return (jnp.minimum(c * steps_per_core + j, total_blocks - 1), 0)

    kernel = _make_f1_kernel(n_rows, block_rows, steps_per_core, need_mask)

    bytes_in = n_rows * LANE * (jnp.dtype(yp2.dtype).itemsize + jnp.dtype(yt2.dtype).itemsize)
    cost = pl.CostEstimate(
        flops=4 * n_rows * LANE,             # 1 mul + 3 adds per element
        transcendentals=0,
        bytes_accessed=bytes_in + num_splits * 8 * LANE * 4,
    )

    partials = pl.pallas_call(
        kernel,
        out_shape=jax.ShapeDtypeStruct((num_splits, 8, LANE), jnp.float32),
        grid_spec=pltpu.PrefetchScalarGridSpec(
            num_scalar_prefetch=0,
            grid=(num_splits, steps_per_core),
            in_specs=[
                pl.BlockSpec((block_rows, LANE), in_map),   # y_pred rows
                pl.BlockSpec((block_rows, LANE), in_map),   # y_true rows
            ],
            out_specs=pl.BlockSpec((1, 8, LANE), lambda c, j: (c, 0, 0)),
            scratch_shapes=[
                pltpu.VMEM((ACC_ROWS, LANE), jnp.float32),  # running sum(yp*yt)
                pltpu.VMEM((ACC_ROWS, LANE), jnp.float32),  # running sum(yp)
                pltpu.VMEM((ACC_ROWS, LANE), jnp.float32),  # running sum(yt)
            ],
        ),
        compiler_params=pltpu.CompilerParams(
            dimension_semantics=("parallel", "arbitrary"),
            vmem_limit_bytes=VMEM_LIMIT_BYTES,
        ),
        cost_estimate=cost,
    )(yp2, yt2)

    # Tiny epilogue: combine per-core partials + tail and apply the F1 formula.
    tp = jnp.sum(partials[:, 0, 0]) + tail_tp
    sp = jnp.sum(partials[:, 1, 0]) + tail_sp
    st = jnp.sum(partials[:, 2, 0]) + tail_st
    return _f1_from_sums(tp, sp, st)   # .mean() of a scalar is the scalar itself


def _f1_ref(y_pred, y_true):
    yp = jnp.ravel(y_pred).astype(jnp.float32)
    yt = jnp.ravel(y_true).astype(jnp.float32)
    tp = jnp.sum(yt * yp)
    fp = jnp.sum((1.0 - yt) * yp)
    fn = jnp.sum(yt * (1.0 - yp))
    precision = tp / (tp + fp + EPSILON)
    recall = tp / (tp + fn + EPSILON)
    f1 = 2.0 * (precision * recall) / (precision + recall + EPSILON)
    return jnp.clip(f1, EPSILON, 1.0 - EPSILON)


if __name__ == "__main__":
    key = jax.random.PRNGKey(0)
    keys = jax.random.split(key, 10)

    # Primary case: probabilistic predictions and binary labels, (2, 4, 16, 16).
    y_pred = jax.random.uniform(keys[0], (2, 4, 16, 16), dtype=jnp.float32)
    y_true = (jax.random.uniform(keys[1], (2, 4, 16, 16)) > 0.5).astype(jnp.float32)
    out = jax.block_until_ready(f1_score(y_pred, y_true))
    ref = _f1_ref(y_pred, y_true)
    assert jnp.allclose(out, ref, atol=2e-5, rtol=1e-4), (out, ref)

    # Odd shape: exercises the masked partial row-block + the <128-element tail.
    yp_odd = jax.random.uniform(keys[2], (9, 259), dtype=jnp.float32)
    yt_odd = (jax.random.uniform(keys[3], (9, 259)) > 0.5).astype(jnp.float32)
    out = jax.block_until_ready(f1_score(yp_odd, yt_odd))
    ref = _f1_ref(yp_odd, yt_odd)
    assert jnp.allclose(out, ref, atol=2e-5, rtol=1e-4), (out, ref)

    # Large case: multi-block, 2-way core split with an odd block count
    # (exercises accumulation across steps, OOB-block clamp+mask, partials combine).
    yp_big = jax.random.uniform(keys[4], (2560, 256), dtype=jnp.float32)
    yt_big = (jax.random.uniform(keys[5], (2560, 256)) > 0.5).astype(jnp.float32)
    out = jax.block_until_ready(f1_score(yp_big, yt_big))
    ref = _f1_ref(yp_big, yt_big)
    assert jnp.allclose(out, ref, atol=2e-5, rtol=1e-4), (out, ref)

    # bf16 inputs: exercises the native-dtype (half HBM bytes) path.
    yp_bf = jax.random.uniform(keys[6], (1024, 160), dtype=jnp.bfloat16)
    yt_bf = (jax.random.uniform(keys[7], (1024, 160)) > 0.5).astype(jnp.bfloat16)
    out = jax.block_until_ready(f1_score(yp_bf, yt_bf))
    ref = _f1_ref(yp_bf, yt_bf)
    assert jnp.allclose(out, ref, atol=2e-5, rtol=1e-4), (out, ref)

    # Tiny input: plain-JAX fast path.
    yp_tiny = jax.random.uniform(keys[8], (3, 5), dtype=jnp.float32)
    yt_tiny = (jax.random.uniform(keys[9], (3, 5)) > 0.5).astype(jnp.float32)
    out = jax.block_until_ready(f1_score(yp_tiny, yt_tiny))
    ref = _f1_ref(yp_tiny, yt_tiny)
    assert jnp.allclose(out, ref, atol=2e-5, rtol=1e-4), (out, ref)

    print("KERNEL_OK")
</pallas_src>

<mosaic_0001>
module attributes {stable_mosaic.version = 11 : i64} {
  func.func @kernel(%arg0: i32, %arg1: i32, %arg2: memref<16x128xf32, #tpu.memory_space<vmem>>, %arg3: memref<16x128xf32, #tpu.memory_space<vmem>>, %arg4: memref<1x8x128xf32, #tpu.memory_space<vmem>>, %arg5: memref<16x128xf32, #tpu.memory_space<vmem>>, %arg6: memref<16x128xf32, #tpu.memory_space<vmem>>, %arg7: memref<16x128xf32, #tpu.memory_space<vmem>>) attributes {dimension_semantics = [#tpu.dimension_semantics<parallel>, #tpu.dimension_semantics<arbitrary>], iteration_bounds = array<i64: 1, 1>, scalar_prefetch = 0 : i64, scratch_operands = 3 : i64, tpu.core_type = #tpu.core_type<tc>, window_params = [{transform_indices = @transform_0, window_bounds = array<i64: 16, 128>}, {transform_indices = @transform_1, window_bounds = array<i64: 16, 128>}, {transform_indices = @transform_2, window_bounds = array<i64: 1, 8, 128>}]} {
    %c0_i32 = arith.constant 0 : i32
    %0 = arith.cmpi eq, %arg1, %c0_i32 : i32
    %1 = arith.extui %0 : i1 to i32
    %c0_i32_0 = arith.constant 0 : i32
    %2 = arith.cmpi ne, %1, %c0_i32_0 : i32
    scf.if %2 {
      %cst_20 = arith.constant 0.000000e+00 : f32
      %23 = vector.broadcast %cst_20 : f32 to vector<16x128xf32>
      %c0_21 = arith.constant 0 : index
      %c0_22 = arith.constant 0 : index
      %24 = vector.load %arg5[%c0_21, %c0_22] : memref<16x128xf32, #tpu.memory_space<vmem>>, vector<16x128xf32>
      tpu.vector_store %arg5[%c0_21, %c0_22], %23 {strides = array<i32>} : memref<16x128xf32, #tpu.memory_space<vmem>>, vector<16x128xf32>,
      %cst_23 = arith.constant 0.000000e+00 : f32
      %25 = vector.broadcast %cst_23 : f32 to vector<16x128xf32>
      %c0_24 = arith.constant 0 : index
      %c0_25 = arith.constant 0 : index
      %26 = vector.load %arg6[%c0_24, %c0_25] : memref<16x128xf32, #tpu.memory_space<vmem>>, vector<16x128xf32>
      tpu.vector_store %arg6[%c0_24, %c0_25], %25 {strides = array<i32>} : memref<16x128xf32, #tpu.memory_space<vmem>>, vector<16x128xf32>,
      %cst_26 = arith.constant 0.000000e+00 : f32
      %27 = vector.broadcast %cst_26 : f32 to vector<16x128xf32>
      %c0_27 = arith.constant 0 : index
      %c0_28 = arith.constant 0 : index
      %28 = vector.load %arg7[%c0_27, %c0_28] : memref<16x128xf32, #tpu.memory_space<vmem>>, vector<16x128xf32>
      tpu.vector_store %arg7[%c0_27, %c0_28], %27 {strides = array<i32>} : memref<16x128xf32, #tpu.memory_space<vmem>>, vector<16x128xf32>,
    } else {
    }
    %c0 = arith.constant 0 : index
    %c0_1 = arith.constant 0 : index
    %3 = vector.load %arg2[%c0, %c0_1] : memref<16x128xf32, #tpu.memory_space<vmem>>, vector<16x128xf32>
    %c0_2 = arith.constant 0 : index
    %c0_3 = arith.constant 0 : index
    %4 = vector.load %arg3[%c0_2, %c0_3] : memref<16x128xf32, #tpu.memory_space<vmem>>, vector<16x128xf32>
    %5 = vector.shape_cast %3 : vector<16x128xf32> to vector<1x16x128xf32>
    %6 = vector.shape_cast %4 : vector<16x128xf32> to vector<1x16x128xf32>
    %c0_4 = arith.constant 0 : index
    %c0_5 = arith.constant 0 : index
    %7 = vector.load %arg5[%c0_4, %c0_5] : memref<16x128xf32, #tpu.memory_space<vmem>>, vector<16x128xf32>
    %8 = arith.mulf %5, %6 : vector<1x16x128xf32>
    %cst = arith.constant dense<0.000000e+00> : vector<16x128xf32>
    %9 = vector.multi_reduction <add>, %8, %cst [0] : vector<1x16x128xf32> to vector<16x128xf32>
    %10 = arith.addf %7, %9 : vector<16x128xf32>
    %c0_6 = arith.constant 0 : index
    %c0_7 = arith.constant 0 : index
    %11 = vector.load %arg5[%c0_6, %c0_7] : memref<16x128xf32, #tpu.memory_space<vmem>>, vector<16x128xf32>
    tpu.vector_store %arg5[%c0_6, %c0_7], %10 {strides = array<i32>} : memref<16x128xf32, #tpu.memory_space<vmem>>, vector<16x128xf32>,
    %c0_8 = arith.constant 0 : index
    %c0_9 = arith.constant 0 : index
    %12 = vector.load %arg6[%c0_8, %c0_9] : memref<16x128xf32, #tpu.memory_space<vmem>>, vector<16x128xf32>
    %cst_10 = arith.constant dense<0.000000e+00> : vector<16x128xf32>
    %13 = vector.multi_reduction <add>, %5, %cst_10 [0] : vector<1x16x128xf32> to vector<16x128xf32>
    %14 = arith.addf %12, %13 : vector<16x128xf32>
    %c0_11 = arith.constant 0 : index
    %c0_12 = arith.constant 0 : index
    %15 = vector.load %arg6[%c0_11, %c0_12] : memref<16x128xf32, #tpu.memory_space<vmem>>, vector<16x128xf32>
    tpu.vector_store %arg6[%c0_11, %c0_12], %14 {strides = array<i32>} : memref<16x128xf32, #tpu.memory_space<vmem>>, vector<16x128xf32>,
    %c0_13 = arith.constant 0 : index
    %c0_14 = arith.constant 0 : index
    %16 = vector.load %arg7[%c0_13, %c0_14] : memref<16x128xf32, #tpu.memory_space<vmem>>, vector<16x128xf32>
    %cst_15 = arith.constant dense<0.000000e+00> : vector<16x128xf32>
    %17 = vector.multi_reduction <add>, %6, %cst_15 [0] : vector<1x16x128xf32> to vector<16x128xf32>
    %18 = arith.addf %16, %17 : vector<16x128xf32>
    %c0_16 = arith.constant 0 : index
    %c0_17 = arith.constant 0 : index
    %19 = vector.load %arg7[%c0_16, %c0_17] : memref<16x128xf32, #tpu.memory_space<vmem>>, vector<16x128xf32>
    tpu.vector_store %arg7[%c0_16, %c0_17], %18 {strides = array<i32>} : memref<16x128xf32, #tpu.memory_space<vmem>>, vector<16x128xf32>,
    %c0_i32_18 = arith.constant 0 : i32
    %20 = arith.cmpi eq, %arg1, %c0_i32_18 : i32
    %21 = arith.extui %20 : i1 to i32
    %c0_i32_19 = arith.constant 0 : i32
    %22 = arith.cmpi ne, %21, %c0_i32_19 : i32
    scf.if %22 {
      %c0_20 = arith.constant 0 : index
      %c0_21 = arith.constant 0 : index
      %23 = vector.load %arg5[%c0_20, %c0_21] : memref<16x128xf32, #tpu.memory_space<vmem>>, vector<16x128xf32>
      %24 = vector.shape_cast %23 : vector<16x128xf32> to vector<1x16x128xf32>
      %cst_22 = arith.constant dense<0.000000e+00> : vector<1xf32>
      %25 = vector.multi_reduction <add>, %24, %cst_22 [1, 2] : vector<1x16x128xf32> to vector<1xf32>
      %26 = vector.shape_cast %25 : vector<1xf32> to vector<1x1x1xf32>
      %27 = vector.extract %26[0, 0, 0] : f32 from vector<1x1x1xf32>
      %c0_23 = arith.constant 0 : index
      %c0_24 = arith.constant 0 : index
      %28 = vector.load %arg6[%c0_23, %c0_24] : memref<16x128xf32, #tpu.memory_space<vmem>>, vector<16x128xf32>
      %29 = vector.shape_cast %28 : vector<16x128xf32> to vector<1x16x128xf32>
      %cst_25 = arith.constant dense<0.000000e+00> : vector<1xf32>
      %30 = vector.multi_reduction <add>, %29, %cst_25 [1, 2] : vector<1x16x128xf32> to vector<1xf32>
      %31 = vector.shape_cast %30 : vector<1xf32> to vector<1x1x1xf32>
      %32 = vector.extract %31[0, 0, 0] : f32 from vector<1x1x1xf32>
      %c0_26 = arith.constant 0 : index
      %c0_27 = arith.constant 0 : index
      %33 = vector.load %arg7[%c0_26, %c0_27] : memref<16x128xf32, #tpu.memory_space<vmem>>, vector<16x128xf32>
      %34 = vector.shape_cast %33 : vector<16x128xf32> to vector<1x16x128xf32>
      %cst_28 = arith.constant dense<0.000000e+00> : vector<1xf32>
      %35 = vector.multi_reduction <add>, %34, %cst_28 [1, 2] : vector<1x16x128xf32> to vector<1xf32>
      %36 = vector.shape_cast %35 : vector<1xf32> to vector<1x1x1xf32>
      %37 = vector.extract %36[0, 0, 0] : f32 from vector<1x1x1xf32>
      %38 = tpu.iota {dimensions = array<i32: 1>} : vector<1x8x128xi32>
      %c0_i32_29 = arith.constant 0 : i32
      %39 = vector.broadcast %c0_i32_29 : i32 to vector<1x8x128xi32>
      %40 = arith.cmpi eq, %38, %39 : vector<1x8x128xi32>
      %c1_i32 = arith.constant 1 : i32
      %41 = vector.broadcast %c1_i32 : i32 to vector<1x8x128xi32>
      %42 = arith.cmpi eq, %38, %41 : vector<1x8x128xi32>
      %c2_i32 = arith.constant 2 : i32
      %43 = vector.broadcast %c2_i32 : i32 to vector<1x8x128xi32>
      %44 = arith.cmpi eq, %38, %43 : vector<1x8x128xi32>
      %cst_30 = arith.constant 0.000000e+00 : f32
      %45 = vector.broadcast %37 : f32 to vector<1x8x128xf32>
      %46 = vector.broadcast %cst_30 : f32 to vector<1x8x128xf32>
      %47 = arith.select %44, %45, %46 : vector<1x8x128xi1>, vector<1x8x128xf32>
      %48 = vector.broadcast %32 : f32 to vector<1x8x128xf32>
      %49 = arith.select %42, %48, %47 : vector<1x8x128xi1>, vector<1x8x128xf32>
      %50 = vector.broadcast %27 : f32 to vector<1x8x128xf32>
      %51 = arith.select %40, %50, %49 : vector<1x8x128xi1>, vector<1x8x128xf32>
      %c0_31 = arith.constant 0 : index
      %c0_32 = arith.constant 0 : index
      %c0_33 = arith.constant 0 : index
      %52 = vector.load %arg4[%c0_31, %c0_32, %c0_33] : memref<1x8x128xf32, #tpu.memory_space<vmem>>, vector<1x8x128xf32>
      tpu.vector_store %arg4[%c0_31, %c0_32, %c0_33], %51 {strides = array<i32>} : memref<1x8x128xf32, #tpu.memory_space<vmem>>, vector<1x8x128xf32>,
    } else {
    }
    return
  }
  func.func @transform_0(%arg0: i32, %arg1: i32) -> (i32, i32) {
    %c1_i32 = arith.constant 1 : i32
    %0 = arith.muli %arg0, %c1_i32 : i32
    %1 = arith.addi %0, %arg1 : i32
    %c0_i32 = arith.constant 0 : i32
    %2 = arith.minsi %1, %c0_i32 : i32
    %c0_i32_0 = arith.constant 0 : i32
    %c0_i32_1 = arith.constant 0 : i32
    return %2, %c0_i32_0 : i32, i32
  }
  func.func @transform_1(%arg0: i32, %arg1: i32) -> (i32, i32) {
    %c1_i32 = arith.constant 1 : i32
    %0 = arith.muli %arg0, %c1_i32 : i32
    %1 = arith.addi %0, %arg1 : i32
    %c0_i32 = arith.constant 0 : i32
    %2 = arith.minsi %1, %c0_i32 : i32
    %c0_i32_0 = arith.constant 0 : i32
    %c0_i32_1 = arith.constant 0 : i32
    return %2, %c0_i32_0 : i32, i32
  }
  func.func @transform_2(%arg0: i32, %arg1: i32) -> (i32, i32, i32) {
    %c0_i32 = arith.constant 0 : i32
    %c0_i32_0 = arith.constant 0 : i32
    %c0_i32_1 = arith.constant 0 : i32
    return %arg0, %c0_i32, %c0_i32_0 : i32, i32, i32
  }
}

</mosaic_0001>

<llo_original>
// kernel: f1_score.1
$region0: #{f1_score.1}
  #allocation0 [shape = 'u32[]', space=smem, size = 0x4, offset = 0x4, fixed_abs, tag = 'smem constant byte address 0x4 - core index']
  #allocation1 [shape = 'u32[144,128]{1,0:T(1,128)}', space=vmem, size = 0x12000, scoped, tag = 'internal scratch']
  #allocation2 [shape = 'f32[16,128]{1,0:T(8,128)}', space=vmem, size = 0x2000, scoped, tag = 'scratch operand']
  #allocation3 [shape = 'f32[16,128]{1,0:T(8,128)}', space=vmem, size = 0x2000, scoped, tag = 'scratch operand']
  #allocation4 [shape = 'f32[16,128]{1,0:T(8,128)}', space=vmem, size = 0x2000, scoped, tag = 'scratch operand']
  %s0 = inlined_call_operand.vmem [shape: f32[16,128], index: 0, kind: input, shape index: {}]
  %s1 = inlined_call_operand.vmem [shape: f32[16,128], index: 1, kind: input, shape index: {}]
  %s2 = inlined_call_operand.vmem [shape: f32[1,8,128], index: 2, kind: output, shape index: {}]
  %s3 = sld [smem:[#allocation0]]
  $region26: #{f1_score.1} parent=0
    _
  %s5 = ssub.s32 1, %s3
  %s6 = scalar_select 0, %s5, %s3
  // Predicated region
  $region2: #{f1_score.1} parent=0 // pred_check
    _
  $region3: #{f1_score.1} parent=0 // pred_check_branch
    %8 = sbr.rel (0) target = $region5
  $region4: #{f1_score.1} parent=0 // pred_region
    %s9 = sadd.s32 0, 0
    %p10 = scmp.lt.s32.totalorder %s9, 0
    %s11 = scalar_select %p10, %s9, 0
    %s12 = smul.u32 2, %s11
    %p13 = scmp.lt.s32.totalorder %s12, 1
    %s14 = scalar_select %p13, %s12, 1
    %s15 = smul.addr %s14, 8
    %s16 = scalar_lea.vmem %s0, %s15
    %s17 = sadd.s32 0, 0
    %p18 = scmp.lt.s32.totalorder %s17, 0
    %s19 = scalar_select %p18, %s17, 0
    %s20 = smul.u32 2, %s19
  $region5: #{f1_score.1} parent=0 // pred_fallthru
    _
  // Predicated region
  $region6: #{f1_score.1} parent=0 // pred_check
    _
  $region7: #{f1_score.1} parent=0 // pred_check_branch
    %22 = sbr.rel (0) target = $region9
  $region8: #{f1_score.1} parent=0 // pred_region
    %s23 = sadd.s32 0, 0
    %p24 = scmp.lt.s32.totalorder %s23, 0
    %s25 = scalar_select %p24, %s23, 0
    %s26 = smul.u32 2, %s25
    %p27 = scmp.lt.s32.totalorder %s26, 1
    %s28 = scalar_select %p27, %s26, 1
    %s29 = smul.addr %s28, 8
    %s30 = scalar_lea.vmem %s1, %s29
    %s31 = sadd.s32 0, 0
    %p32 = scmp.lt.s32.totalorder %s31, 0
    %s33 = scalar_select %p32, %s31, 0
    %s34 = smul.u32 2, %s33
  $region9: #{f1_score.1} parent=0 // pred_fallthru
    _
  %s35 = sadd.s32 0, 0
  %p36 = scmp.lt.s32.totalorder %s35, 0
  %s37 = scalar_select %p36, %s35, 0
  %s38 = smul.u32 2, %s37
  %p39 = scmp.lt.s32.totalorder %s38, 1
  %s40 = scalar_select %p39, %s38, 1
  %s41 = smul.addr %s40, 8
  %s42 = scalar_lea.vmem %s0, %s41
  %s43 = sadd.s32 0, 0
  %p44 = scmp.lt.s32.totalorder %s43, 0
  %s45 = scalar_select %p44, %s43, 0
  %s46 = smul.u32 2, %s45
  %p47 = scmp.lt.s32.totalorder %s46, 1
  %s48 = scalar_select %p47, %s46, 1
  %s49 = smul.addr %s48, 8
  %s50 = scalar_lea.vmem %s1, %s49
  %s51 = sadd.s32 0, 0
  %p52 = scmp.lt.s32.totalorder %s51, 0
  %s53 = scalar_select %p52, %s51, 0
  %s54 = smul.u32 2, %s53
  %p55 = scmp.lt.s32.totalorder %s54, 1
  %s56 = scalar_select %p55, %s54, 1
  %s57 = smul.addr %s56, 8
  %s58 = scalar_lea.vmem %s0, %s57
  %s59 = sadd.s32 0, 0
  %p60 = scmp.lt.s32.totalorder %s59, 0
  %s61 = scalar_select %p60, %s59, 0
  %s62 = smul.u32 2, %s61
  %s63 = sadd.s32 0, 0
  %p64 = scmp.lt.s32.totalorder %s63, 0
  %s65 = scalar_select %p64, %s63, 0
  %s66 = smul.u32 2, %s65
  %p67 = scmp.lt.s32.totalorder %s66, 1
  %s68 = scalar_select %p67, %s66, 1
  %s69 = smul.addr %s68, 8
  %s70 = scalar_lea.vmem %s1, %s69
  %s71 = sadd.s32 0, 0
  %p72 = scmp.lt.s32.totalorder %s71, 0
  %s73 = scalar_select %p72, %s71, 0
  %s74 = smul.u32 2, %s73
  %p75 = scmp.eq.s32.totalorder 0, 0
  // Predicated region
  $region10: #{f1_score.1} parent=0 // pred_check
    %p76 = pneg %p75
  $region11: #{f1_score.1} parent=0 // pred_check_branch
    %78 = sbr.rel (%p76) target = $region13
  $region12: #{f1_score.1} parent=0 // pred_region
    %79 = vst [vmem:[#allocation2] sm:$0xff] 0.0
    %80 = vst [vmem:[#allocation2 + $0x8] sm:$0xff] 0.0
    %81 = vst [vmem:[#allocation3] sm:$0xff] 0.0
    %82 = vst [vmem:[#allocation3 + $0x8] sm:$0xff] 0.0
    %83 = vst [vmem:[#allocation4] sm:$0xff] 0.0
    %84 = vst [vmem:[#allocation4 + $0x8] sm:$0xff] 0.0
  $region13: #{f1_score.1} parent=0 // pred_fallthru
    _
  %v85 = vld [vmem:[%s58] sm:$0xff]
  %v86 = vld [vmem:[%s58 + $0x8] sm:$0xff]
  %v87 = vld [vmem:[%s70] sm:$0xff]
  %v88 = vld [vmem:[%s70 + $0x8] sm:$0xff]
  %v89 = vld [vmem:[#allocation2] sm:$0xff]
  %v90 = vld [vmem:[#allocation2 + $0x8] sm:$0xff]
  %v91 = vmul.f32 %v85, %v87
  %v92 = vmul.f32 %v86, %v88
  %v93 = vadd.f32 %v91, 0.0
  %v94 = vadd.f32 %v92, 0.0
  %v95 = vadd.f32 %v89, %v93
  %v96 = vadd.f32 %v90, %v94
  %97 = vst [vmem:[#allocation2] sm:$0xff] %v95
  %98 = vst [vmem:[#allocation2 + $0x8] sm:$0xff] %v96
  %v99 = vld [vmem:[#allocation3] sm:$0xff]
  %v100 = vld [vmem:[#allocation3 + $0x8] sm:$0xff]
  %v101 = vadd.f32 %v85, 0.0
  %v102 = vadd.f32 %v86, 0.0
  %v103 = vadd.f32 %v99, %v101
  %v104 = vadd.f32 %v100, %v102
  %105 = vst [vmem:[#allocation3] sm:$0xff] %v103
  %106 = vst [vmem:[#allocation3 + $0x8] sm:$0xff] %v104
  %v107 = vld [vmem:[#allocation4] sm:$0xff]
  %v108 = vld [vmem:[#allocation4 + $0x8] sm:$0xff]
  %v109 = vadd.f32 %v87, 0.0
  %v110 = vadd.f32 %v88, 0.0
  %v111 = vadd.f32 %v107, %v109
  %v112 = vadd.f32 %v108, %v110
  %113 = vst [vmem:[#allocation4] sm:$0xff] %v111
  %114 = vst [vmem:[#allocation4 + $0x8] sm:$0xff] %v112
  // Predicated region
  $region14: #{f1_score.1} parent=0 // pred_check
    %p115 = pneg %p75
  $region15: #{f1_score.1} parent=0 // pred_check_branch
    %117 = sbr.rel (%p115) target = $region17
  $region16: #{f1_score.1} parent=0 // pred_region
    %v118 = vld [vmem:[#allocation2] sm:$0xff]
    %v119 = vld [vmem:[#allocation2 + $0x8] sm:$0xff]
    %v120 = vadd.f32 %v118, %v119
    %121 = vadd.xlane.f32.xlu0 %v120
    %v122 = vpop.xlane.xlu0 %121
    %v123 = vrot.slane %v122, 4
    %v124 = vadd.f32 %v122, %v123
    %v125 = vrot.slane %v124, 2
    %v126 = vadd.f32 %v124, %v125
    %v127 = vrot.slane %v126, 1
    %v128 = vadd.f32 %v126, %v127
    %s129 = vtos %v128
    %v130 = vld [vmem:[#allocation3] sm:$0xff]
    %v131 = vld [vmem:[#allocation3 + $0x8] sm:$0xff]
    %v132 = vadd.f32 %v130, %v131
    %133 = vadd.xlane.f32.xlu0 %v132
    %v134 = vpop.xlane.xlu0 %133
    %v135 = vrot.slane %v134, 4
    %v136 = vadd.f32 %v134, %v135
    %v137 = vrot.slane %v136, 2
    %v138 = vadd.f32 %v136, %v137
    %v139 = vrot.slane %v138, 1
    %v140 = vadd.f32 %v138, %v139
    %s141 = vtos %v140
    %v142 = vld [vmem:[#allocation4] sm:$0xff]
    %v143 = vld [vmem:[#allocation4 + $0x8] sm:$0xff]
    %v144 = vadd.f32 %v142, %v143
    %145 = vadd.xlane.f32.xlu0 %v144
    %v146 = vpop.xlane.xlu0 %145
    %v147 = vrot.slane %v146, 4
    %v148 = vadd.f32 %v146, %v147
    %v149 = vrot.slane %v148, 2
    %v150 = vadd.f32 %v148, %v149
    %v151 = vrot.slane %v150, 1
    %v152 = vadd.f32 %v150, %v151
    %s153 = vtos %v152
    %v154 = vlaneseq
    %v155 = vshrl.u32 %v154, 7
    %vm156 = vcmp.eq.s32.totalorder %v155, 0
    %vm157 = vcmp.eq.s32.totalorder %v155, 1
    %vm158 = vcmp.eq.s32.totalorder %v155, 2
    %v159 = vstv %s153
    %v160 = vsel %vm158, %v159, 0.0
    %v161 = vstv %s141
    %v162 = vsel %vm157, %v161, %v160
    %v163 = vstv %s129
    %v164 = vsel %vm156, %v163, %v162
    %165 = vst [vmem:[%s2] sm:$0xff] %v164
  $region17: #{f1_score.1} parent=0 // pred_fallthru
    _
  // Predicated region
  $region18: #{f1_score.1} parent=0 // pred_check
    _
  $region19: #{f1_score.1} parent=0 // pred_check_branch
    %167 = sbr.rel (0) target = $region21
  $region20: #{f1_score.1} parent=0 // pred_region
    _
  $region21: #{f1_score.1} parent=0 // pred_fallthru
    _
  // Predicated region
  $region22: #{f1_score.1} parent=0 // pred_check
    _
  $region23: #{f1_score.1} parent=0 // pred_check_branch
    %169 = sbr.rel (0) target = $region25
  $region24: #{f1_score.1} parent=0 // pred_region
    _
  $region25: #{f1_score.1} parent=0 // pred_fallthru
    _

</llo_original>
